<compile_context>
chip_gen: v7x
topology: tpu7x:2x2x1
jax: 0.10.0
libtpu: 0.0.40
codegen_flags: <defaults>
</compile_context>

<pallas_src>
import functools

import jax
import jax.numpy as jnp
from jax.experimental import pallas as pl
from jax.experimental.pallas import tpu as pltpu


_LANE = 128
_SUBLANE = 8
_VMEM_BUDGET = 40 * 1024 * 1024   # block budget used when auto-sizing tile_b
_VMEM_LIMIT = 48 * 1024 * 1024    # scoped VMEM limit passed to the compiler
_MAX_TILE_B = 512                 # >=512 rows reaches ~85% of the HBM roofline


def _round_up(v, m):
    return ((v + m - 1) // m) * m


def _pick_tile_b(batch, in_pad, out_pad, degree):
    """Largest batch tile (<= 512, multiple of 8) that fits the VMEM budget."""
    # Resident regardless of tile size: double-buffered bf16 coeffs (constant
    # block -> DMA'd once, but two buffers are still allocated) + gamma/beta.
    static = 2 * (degree + 1) * in_pad * out_pad * 2 + 4 * out_pad * 4
    # Per batch-row: double-buffered f32 x and out blocks, f32 recurrence
    # values, bf16 fused-matmul LHS and the f32 accumulator / LN temporaries.
    per_row = (2 * in_pad * 4 + 2 * out_pad * 4
               + (degree + 1) * in_pad * 4 + (degree + 1) * in_pad * 2
               + 2 * out_pad * 4)
    cap = max(_SUBLANE, (_VMEM_BUDGET - static) // max(per_row, 1))
    cap = max(_SUBLANE, (cap // _SUBLANE) * _SUBLANE)
    if batch <= min(cap, _MAX_TILE_B):
        return batch   # single block: dims equal to the full array are exempt
    return min(_MAX_TILE_B, cap)


# ---------------------------------------------------------------------------
# Pallas kernel: one GottliebKANLayer
# ---------------------------------------------------------------------------
def _gottlieb_layer_kernel(alpha_ref, x_ref, coeffs_ref, gamma_ref, beta_ref,
                           o_ref, *, degree, real_out_dim, use_layernorm):
    # alpha_ref : SMEM (1,)             scalar-prefetched
    # x_ref     : VMEM (TB, Ip)   f32   (Ip = padded input width)
    # coeffs_ref: VMEM ((D+1)*Ip, Op) bf16, rows ordered degree-major
    # gamma_ref : VMEM (1, Op)    f32   (zero in padded columns)
    # beta_ref  : VMEM (1, Op)    f32   (zero in padded columns)
    # o_ref     : VMEM (TB, Op)   f32   lane-dense (Op % 128 == 0)
    alpha = alpha_ref[0]
    x = jax.nn.sigmoid(x_ref[...].astype(jnp.float32))

    # Gottlieb recurrence, kept in f32 (v5e has no bf16 VPU path):
    #   G_0 = 1
    #   G_1 = 2*alpha*x
    #   G_n = 2*(alpha + n - 1)*x*G_{n-1} - (alpha + 2n - 2)*G_{n-2}
    basis = [jnp.ones_like(x)]
    if degree >= 1:
        basis.append(2.0 * alpha * x)
    for n in range(2, degree + 1):
        basis.append(2.0 * (alpha + (n - 1)) * x * basis[-1]
                     - (alpha + (2 * n - 2)) * basis[-2])

    # Fused contraction: one (TB, (D+1)*Ip) x ((D+1)*Ip, Op) bf16 matmul with
    # f32 accumulation instead of degree+1 tiny-K matmuls.
    g = jnp.concatenate(basis, axis=-1).astype(jnp.bfloat16)
    acc = jnp.dot(g, coeffs_ref[...], preferred_element_type=jnp.float32)

    if use_layernorm:
        # torch.nn.LayerNorm(real_out_dim): biased variance, eps=1e-5.
        # Padded output columns of `acc` are exactly zero (zero coeff columns),
        # so plain sums over the padded lane width divided by the *real* width
        # give the correct mean / E[x^2]; var = E[x^2] - mean^2.
        inv_n = 1.0 / float(real_out_dim)
        mean = jnp.sum(acc, axis=-1, keepdims=True) * inv_n
        mean_sq = jnp.sum(acc * acc, axis=-1, keepdims=True) * inv_n
        var = mean_sq - mean * mean
        acc = (acc - mean) * jax.lax.rsqrt(var + 1e-5)
        # gamma/beta are zero in padded columns -> padded outputs stay 0.
        acc = acc * gamma_ref[...] + beta_ref[...]

    o_ref[...] = acc.astype(o_ref.dtype)


def gottlieb_kan_layer(x, alpha, coeffs_flat, gamma_p, beta_p, *,
                       degree, real_out_dim, use_layernorm, tile_b=None):
    """One GottliebKANLayer forward.  x: (B, Ip) f32 -> (B, Op) f32."""
    B, in_pad = x.shape
    k_flat, out_pad = coeffs_flat.shape
    assert k_flat == (degree + 1) * in_pad
    assert out_pad % _LANE == 0

    if tile_b is None:
        tile_b = _pick_tile_b(B, in_pad, out_pad, degree)

    kernel = functools.partial(_gottlieb_layer_kernel, degree=degree,
                               real_out_dim=real_out_dim,
                               use_layernorm=use_layernorm)

    return pl.pallas_call(
        kernel,
        out_shape=jax.ShapeDtypeStruct((B, out_pad), jnp.float32),
        grid_spec=pltpu.PrefetchScalarGridSpec(
            num_scalar_prefetch=1,                   # alpha goes to SMEM
            grid=(pl.cdiv(B, tile_b),),              # ragged last block is ok
            in_specs=[
                pl.BlockSpec((tile_b, in_pad), lambda i, a: (i, 0)),
                # Constant block -> fetched once across the whole grid.
                pl.BlockSpec(((degree + 1) * in_pad, out_pad),
                             lambda i, a: (0, 0)),
                pl.BlockSpec((1, out_pad), lambda i, a: (0, 0)),
                pl.BlockSpec((1, out_pad), lambda i, a: (0, 0)),
            ],
            out_specs=pl.BlockSpec((tile_b, out_pad), lambda i, a: (i, 0)),
        ),
        compiler_params=pltpu.CompilerParams(
            dimension_semantics=("parallel",),
            vmem_limit_bytes=_VMEM_LIMIT),
    )(alpha, x, coeffs_flat, gamma_p, beta_p)


# ---------------------------------------------------------------------------
# Parameter init (deterministic, mirrors GottliebKAN.__init__) + kernel layouts
# ---------------------------------------------------------------------------
def init_gottlieb_kan(key, layers_hidden, spline_order=3):
    lh = ([layers_hidden[0]]
          + sum([[d] * 2 for d in layers_hidden[1:-1]], [])
          + [layers_hidden[-1]])
    dims = list(zip(lh, lh[1:-1])) + [(lh[-2], lh[-1])]
    use_ln = [True] * (len(dims) - 1) + [False]

    params = []
    prev_out_pad = None
    for li, ((i_dim, o_dim), ln) in enumerate(zip(dims, use_ln)):
        key, k_alpha, k_coef = jax.random.split(key, 3)
        alpha = jax.random.normal(k_alpha, (1,), jnp.float32)
        coeffs = (jax.random.normal(k_coef, (i_dim, o_dim, spline_order + 1),
                                    jnp.float32)
                  * (1.0 / (i_dim * (spline_order + 1))))
        gamma = jnp.ones((o_dim,), jnp.float32)     # LayerNorm default weight
        beta = jnp.zeros((o_dim,), jnp.float32)     # LayerNorm default bias

        # Kernel layout (prepared ONCE here, never in the hot path):
        # inputs arrive at the previous layer's padded width, outputs are
        # padded to a lane-dense multiple of 128.
        in_pad = i_dim if li == 0 else prev_out_pad
        out_pad = _round_up(o_dim, _LANE)

        # (I, O, D+1) -> (D+1, I, O) -> zero-pad -> flatten to ((D+1)*Ip, Op).
        ct = jnp.transpose(coeffs, (2, 0, 1))
        ct = jnp.pad(ct, ((0, 0), (0, in_pad - i_dim), (0, out_pad - o_dim)))
        coeffs_flat = ct.reshape((spline_order + 1) * in_pad,
                                 out_pad).astype(jnp.bfloat16)
        gamma_p = jnp.pad(gamma, (0, out_pad - o_dim)).reshape(1, out_pad)
        beta_p = jnp.pad(beta, (0, out_pad - o_dim)).reshape(1, out_pad)

        params.append(dict(
            # raw parameters (PyTorch layout, used by the pure-JAX reference)
            alpha=alpha, coeffs=coeffs, gamma=gamma, beta=beta,
            # kernel-ready layouts
            coeffs_flat=coeffs_flat, gamma_p=gamma_p, beta_p=beta_p,
            in_pad=in_pad, out_pad=out_pad, out_dim=o_dim,
            degree=spline_order, use_layernorm=ln))
        prev_out_pad = out_pad
    return params


def gottlieb_kan_forward(params, x, layers_hidden):
    y = x.reshape(-1, layers_hidden[0]).astype(jnp.float32)
    for p in params:
        y = gottlieb_kan_layer(y, p["alpha"], p["coeffs_flat"],
                               p["gamma_p"], p["beta_p"],
                               degree=p["degree"],
                               real_out_dim=p["out_dim"],
                               use_layernorm=p["use_layernorm"])
    # Activations stay lane-padded between layers; slice the real columns
    # exactly once at the end of the network.
    return y[:, :params[-1]["out_dim"]]


# ---------------------------------------------------------------------------
# Pure-JAX f32 reference (mirrors the PyTorch module exactly) for validation
# ---------------------------------------------------------------------------
def _ref_layer(x, alpha, coeffs, gamma, beta, degree, use_layernorm):
    a = alpha[0]
    x = jax.nn.sigmoid(x)
    basis = [jnp.ones_like(x)]
    if degree >= 1:
        basis.append(2.0 * a * x)
    for n in range(2, degree + 1):
        basis.append(2.0 * (a + n - 1) * x * basis[n - 1]
                     - (a + 2 * n - 2) * basis[n - 2])
    gb = jnp.stack(basis, axis=-1)                       # (B, I, D+1)
    y = jnp.einsum('bid,iod->bo', gb, coeffs)
    if use_layernorm:
        mean = jnp.mean(y, axis=-1, keepdims=True)
        var = jnp.mean(jnp.square(y - mean), axis=-1, keepdims=True)
        y = (y - mean) * jax.lax.rsqrt(var + 1e-5) * gamma + beta
    return y


def _ref_forward(params, x, layers_hidden):
    y = x.reshape(-1, layers_hidden[0]).astype(jnp.float32)
    for p in params:
        y = _ref_layer(y, p["alpha"], p["coeffs"], p["gamma"], p["beta"],
                       p["degree"], p["use_layernorm"])
    return y


# ---------------------------------------------------------------------------
if __name__ == "__main__":
    layers_hidden = [4, 32, 8]
    spline_order = 3

    key = jax.random.PRNGKey(0)
    key, k_x, k_p = jax.random.split(key, 3)

    # x is viewed as (-1, layers_hidden[0]) inside the forward, as in PyTorch.
    x = jax.random.normal(k_x, (2, 8, 4), jnp.float32)

    params = init_gottlieb_kan(k_p, layers_hidden, spline_order)

    fwd = jax.jit(lambda xx: gottlieb_kan_forward(params, xx, layers_hidden))
    out = jax.block_until_ready(fwd(x))

    ref = _ref_forward(params, x, layers_hidden)
    assert out.shape == (16, layers_hidden[-1])

    # bf16 matmul operands (f32 accumulation) give small deviations vs. the
    # pure-f32 reference; tolerance loosened accordingly (per review note).
    scale = float(jnp.max(jnp.abs(ref)))
    err = float(jnp.max(jnp.abs(out - ref)))
    assert err <= 5e-2 * max(1.0, scale), (err, scale)

    print("KERNEL_OK")
</pallas_src>

<mosaic_0001>
module attributes {stable_mosaic.version = 11 : i64} {
  func.func @_gottlieb_layer_kernel(%arg0: i32, %arg1: memref<1xf32, #tpu.memory_space<smem>>, %arg2: memref<16x4xf32, #tpu.memory_space<vmem>>, %arg3: memref<16x128xbf16, #tpu.memory_space<vmem>>, %arg4: memref<1x128xf32, #tpu.memory_space<vmem>>, %arg5: memref<1x128xf32, #tpu.memory_space<vmem>>, %arg6: memref<16x128xf32, #tpu.memory_space<vmem>>) attributes {dimension_semantics = [#tpu.dimension_semantics<parallel>], iteration_bounds = array<i64: 1>, scalar_prefetch = 1 : i64, scratch_operands = 0 : i64, tpu.core_type = #tpu.core_type<tc>, window_params = [{transform_indices = @transform_0, window_bounds = array<i64: 16, 4>}, {pipeline_mode = #tpu.pipeline_mode<synchronous>, transform_indices = @transform_1, window_bounds = array<i64: 16, 128>}, {pipeline_mode = #tpu.pipeline_mode<synchronous>, transform_indices = @transform_2, window_bounds = array<i64: 1, 128>}, {pipeline_mode = #tpu.pipeline_mode<synchronous>, transform_indices = @transform_3, window_bounds = array<i64: 1, 128>}, {transform_indices = @transform_4, window_bounds = array<i64: 16, 128>}]} {
    %c0 = arith.constant 0 : index
    %0 = memref.load %arg1[%c0] : memref<1xf32, #tpu.memory_space<smem>>
    %c0_0 = arith.constant 0 : index
    %c0_1 = arith.constant 0 : index
    %1 = vector.load %arg2[%c0_0, %c0_1] : memref<16x4xf32, #tpu.memory_space<vmem>>, vector<16x4xf32>
    %2 = arith.negf %1 : vector<16x4xf32>
    %3 = math.exp %2 : vector<16x4xf32>
    %cst = arith.constant 1.000000e+00 : f32
    %4 = vector.broadcast %cst : f32 to vector<16x4xf32>
    %5 = arith.addf %4, %3 : vector<16x4xf32>
    %6 = arith.divf %4, %5 : vector<16x4xf32>
    %cst_2 = arith.constant 1.000000e+00 : f32
    %7 = vector.broadcast %cst_2 : f32 to vector<16x4xf32>
    %cst_3 = arith.constant 2.000000e+00 : f32
    %8 = arith.mulf %cst_3, %0 : f32
    %9 = vector.broadcast %8 : f32 to vector<16x4xf32>
    %10 = arith.mulf %9, %6 : vector<16x4xf32>
    %cst_4 = arith.constant 1.000000e+00 : f32
    %11 = arith.addf %0, %cst_4 : f32
    %cst_5 = arith.constant 2.000000e+00 : f32
    %12 = arith.mulf %cst_5, %11 : f32
    %13 = vector.broadcast %12 : f32 to vector<16x4xf32>
    %14 = arith.mulf %13, %6 : vector<16x4xf32>
    %15 = arith.mulf %14, %10 : vector<16x4xf32>
    %cst_6 = arith.constant 2.000000e+00 : f32
    %16 = arith.addf %0, %cst_6 : f32
    %17 = vector.broadcast %16 : f32 to vector<16x4xf32>
    %18 = arith.mulf %17, %7 : vector<16x4xf32>
    %19 = arith.subf %15, %18 : vector<16x4xf32>
    %cst_7 = arith.constant 2.000000e+00 : f32
    %20 = arith.addf %0, %cst_7 : f32
    %cst_8 = arith.constant 2.000000e+00 : f32
    %21 = arith.mulf %cst_8, %20 : f32
    %22 = vector.broadcast %21 : f32 to vector<16x4xf32>
    %23 = arith.mulf %22, %6 : vector<16x4xf32>
    %24 = arith.mulf %23, %19 : vector<16x4xf32>
    %cst_9 = arith.constant 4.000000e+00 : f32
    %25 = arith.addf %0, %cst_9 : f32
    %26 = vector.broadcast %25 : f32 to vector<16x4xf32>
    %27 = arith.mulf %26, %10 : vector<16x4xf32>
    %28 = arith.subf %24, %27 : vector<16x4xf32>
    %29 = tpu.concatenate %7, %10, %19, %28 in 1 : vector<16x4xf32>, vector<16x4xf32>, vector<16x4xf32>, vector<16x4xf32> -> vector<16x16xf32>
    %30 = arith.truncf %29 : vector<16x16xf32> to vector<16x16xbf16>
    %c0_10 = arith.constant 0 : index
    %c0_11 = arith.constant 0 : index
    %31 = vector.load %arg3[%c0_10, %c0_11] : memref<16x128xbf16, #tpu.memory_space<vmem>>, vector<16x128xbf16>
    %cst_12 = arith.constant dense<0.000000e+00> : vector<16x128xf32>
    %32 = tpu.matmul %30, %31, %cst_12 {dimension_numbers = #tpu.dot_dimension_numbers<[1], [0], [0], [1], [0, 0, 1, 1], [], []>} : vector<16x16xbf16>, vector<16x128xbf16>, vector<16x128xf32> -> vector<16x128xf32>
    %cst_13 = arith.constant dense<0.000000e+00> : vector<16xf32>
    %33 = vector.multi_reduction <add>, %32, %cst_13 [1] : vector<16x128xf32> to vector<16xf32>
    %34 = vector.shape_cast %33 : vector<16xf32> to vector<16x1xf32>
    %cst_14 = arith.constant 3.125000e-02 : f32
    %35 = vector.broadcast %cst_14 : f32 to vector<16x1xf32>
    %36 = arith.mulf %34, %35 : vector<16x1xf32>
    %37 = arith.mulf %32, %32 : vector<16x128xf32>
    %cst_15 = arith.constant dense<0.000000e+00> : vector<16xf32>
    %38 = vector.multi_reduction <add>, %37, %cst_15 [1] : vector<16x128xf32> to vector<16xf32>
    %39 = vector.shape_cast %38 : vector<16xf32> to vector<16x1xf32>
    %cst_16 = arith.constant 3.125000e-02 : f32
    %40 = vector.broadcast %cst_16 : f32 to vector<16x1xf32>
    %41 = arith.mulf %39, %40 : vector<16x1xf32>
    %42 = arith.mulf %36, %36 : vector<16x1xf32>
    %43 = arith.subf %41, %42 : vector<16x1xf32>
    %44 = vector.broadcast %36 : vector<16x1xf32> to vector<16x128xf32>
    %45 = arith.subf %32, %44 : vector<16x128xf32>
    %cst_17 = arith.constant 9.99999974E-6 : f32
    %46 = vector.broadcast %cst_17 : f32 to vector<16x1xf32>
    %47 = arith.addf %43, %46 : vector<16x1xf32>
    %48 = math.rsqrt %47 : vector<16x1xf32>
    %49 = vector.broadcast %48 : vector<16x1xf32> to vector<16x128xf32>
    %50 = arith.mulf %45, %49 : vector<16x128xf32>
    %c0_18 = arith.constant 0 : index
    %c0_19 = arith.constant 0 : index
    %51 = vector.load %arg4[%c0_18, %c0_19] : memref<1x128xf32, #tpu.memory_space<vmem>>, vector<1x128xf32>
    %52 = vector.broadcast %51 : vector<1x128xf32> to vector<16x128xf32>
    %53 = arith.mulf %50, %52 : vector<16x128xf32>
    %c0_20 = arith.constant 0 : index
    %c0_21 = arith.constant 0 : index
    %54 = vector.load %arg5[%c0_20, %c0_21] : memref<1x128xf32, #tpu.memory_space<vmem>>, vector<1x128xf32>
    %55 = vector.broadcast %54 : vector<1x128xf32> to vector<16x128xf32>
    %56 = arith.addf %53, %55 : vector<16x128xf32>
    %c0_22 = arith.constant 0 : index
    %c0_23 = arith.constant 0 : index
    %57 = vector.load %arg6[%c0_22, %c0_23] : memref<16x128xf32, #tpu.memory_space<vmem>>, vector<16x128xf32>
    tpu.vector_store %arg6[%c0_22, %c0_23], %56 {strides = array<i32>} : memref<16x128xf32, #tpu.memory_space<vmem>>, vector<16x128xf32>,
    return
  }
  func.func @transform_0(%arg0: i32, %arg1: memref<1xf32, #tpu.memory_space<smem>>) -> (i32, i32) {
    %c0_i32 = arith.constant 0 : i32
    %c0_i32_0 = arith.constant 0 : i32
    return %arg0, %c0_i32 : i32, i32
  }
  func.func @transform_1(%arg0: i32, %arg1: memref<1xf32, #tpu.memory_space<smem>>) -> (i32, i32) {
    %c0_i32 = arith.constant 0 : i32
    %c0_i32_0 = arith.constant 0 : i32
    %c0_i32_1 = arith.constant 0 : i32
    return %c0_i32, %c0_i32_0 : i32, i32
  }
  func.func @transform_2(%arg0: i32, %arg1: memref<1xf32, #tpu.memory_space<smem>>) -> (i32, i32) {
    %c0_i32 = arith.constant 0 : i32
    %c0_i32_0 = arith.constant 0 : i32
    %c0_i32_1 = arith.constant 0 : i32
    return %c0_i32, %c0_i32_0 : i32, i32
  }
  func.func @transform_3(%arg0: i32, %arg1: memref<1xf32, #tpu.memory_space<smem>>) -> (i32, i32) {
    %c0_i32 = arith.constant 0 : i32
    %c0_i32_0 = arith.constant 0 : i32
    %c0_i32_1 = arith.constant 0 : i32
    return %c0_i32, %c0_i32_0 : i32, i32
  }
  func.func @transform_4(%arg0: i32, %arg1: memref<1xf32, #tpu.memory_space<smem>>) -> (i32, i32) {
    %c0_i32 = arith.constant 0 : i32
    %c0_i32_0 = arith.constant 0 : i32
    return %arg0, %c0_i32 : i32, i32
  }
}

module attributes {stable_mosaic.version = 11 : i64} {
  func.func @_gottlieb_layer_kernel(%arg0: i32, %arg1: memref<1xf32, #tpu.memory_space<smem>>, %arg2: memref<16x128xf32, #tpu.memory_space<vmem>>, %arg3: memref<512x128xbf16, #tpu.memory_space<vmem>>, %arg4: memref<1x128xf32, #tpu.memory_space<vmem>>, %arg5: memref<1x128xf32, #tpu.memory_space<vmem>>, %arg6: memref<16x128xf32, #tpu.memory_space<vmem>>) attributes {dimension_semantics = [#tpu.dimension_semantics<parallel>], iteration_bounds = array<i64: 1>, scalar_prefetch = 1 : i64, scratch_operands = 0 : i64, tpu.core_type = #tpu.core_type<tc>, window_params = [{transform_indices = @transform_0, window_bounds = array<i64: 16, 128>}, {pipeline_mode = #tpu.pipeline_mode<synchronous>, transform_indices = @transform_1, window_bounds = array<i64: 512, 128>}, {pipeline_mode = #tpu.pipeline_mode<synchronous>, transform_indices = @transform_2, window_bounds = array<i64: 1, 128>}, {pipeline_mode = #tpu.pipeline_mode<synchronous>, transform_indices = @transform_3, window_bounds = array<i64: 1, 128>}, {transform_indices = @transform_4, window_bounds = array<i64: 16, 128>}]} {
    %c0 = arith.constant 0 : index
    %0 = memref.load %arg1[%c0] : memref<1xf32, #tpu.memory_space<smem>>
    %c0_0 = arith.constant 0 : index
    %c0_1 = arith.constant 0 : index
    %1 = vector.load %arg2[%c0_0, %c0_1] : memref<16x128xf32, #tpu.memory_space<vmem>>, vector<16x128xf32>
    %2 = arith.negf %1 : vector<16x128xf32>
    %3 = math.exp %2 : vector<16x128xf32>
    %cst = arith.constant 1.000000e+00 : f32
    %4 = vector.broadcast %cst : f32 to vector<16x128xf32>
    %5 = arith.addf %4, %3 : vector<16x128xf32>
    %6 = arith.divf %4, %5 : vector<16x128xf32>
    %cst_2 = arith.constant 1.000000e+00 : f32
    %7 = vector.broadcast %cst_2 : f32 to vector<16x128xf32>
    %cst_3 = arith.constant 2.000000e+00 : f32
    %8 = arith.mulf %cst_3, %0 : f32
    %9 = vector.broadcast %8 : f32 to vector<16x128xf32>
    %10 = arith.mulf %9, %6 : vector<16x128xf32>
    %cst_4 = arith.constant 1.000000e+00 : f32
    %11 = arith.addf %0, %cst_4 : f32
    %cst_5 = arith.constant 2.000000e+00 : f32
    %12 = arith.mulf %cst_5, %11 : f32
    %13 = vector.broadcast %12 : f32 to vector<16x128xf32>
    %14 = arith.mulf %13, %6 : vector<16x128xf32>
    %15 = arith.mulf %14, %10 : vector<16x128xf32>
    %cst_6 = arith.constant 2.000000e+00 : f32
    %16 = arith.addf %0, %cst_6 : f32
    %17 = vector.broadcast %16 : f32 to vector<16x128xf32>
    %18 = arith.mulf %17, %7 : vector<16x128xf32>
    %19 = arith.subf %15, %18 : vector<16x128xf32>
    %cst_7 = arith.constant 2.000000e+00 : f32
    %20 = arith.addf %0, %cst_7 : f32
    %cst_8 = arith.constant 2.000000e+00 : f32
    %21 = arith.mulf %cst_8, %20 : f32
    %22 = vector.broadcast %21 : f32 to vector<16x128xf32>
    %23 = arith.mulf %22, %6 : vector<16x128xf32>
    %24 = arith.mulf %23, %19 : vector<16x128xf32>
    %cst_9 = arith.constant 4.000000e+00 : f32
    %25 = arith.addf %0, %cst_9 : f32
    %26 = vector.broadcast %25 : f32 to vector<16x128xf32>
    %27 = arith.mulf %26, %10 : vector<16x128xf32>
    %28 = arith.subf %24, %27 : vector<16x128xf32>
    %29 = tpu.concatenate %7, %10, %19, %28 in 1 : vector<16x128xf32>, vector<16x128xf32>, vector<16x128xf32>, vector<16x128xf32> -> vector<16x512xf32>
    %30 = arith.truncf %29 : vector<16x512xf32> to vector<16x512xbf16>
    %c0_10 = arith.constant 0 : index
    %c0_11 = arith.constant 0 : index
    %31 = vector.load %arg3[%c0_10, %c0_11] : memref<512x128xbf16, #tpu.memory_space<vmem>>, vector<512x128xbf16>
    %cst_12 = arith.constant dense<0.000000e+00> : vector<16x128xf32>
    %32 = tpu.matmul %30, %31, %cst_12 {dimension_numbers = #tpu.dot_dimension_numbers<[1], [0], [0], [1], [0, 0, 1, 1], [], []>} : vector<16x512xbf16>, vector<512x128xbf16>, vector<16x128xf32> -> vector<16x128xf32>
    %cst_13 = arith.constant dense<0.000000e+00> : vector<16xf32>
    %33 = vector.multi_reduction <add>, %32, %cst_13 [1] : vector<16x128xf32> to vector<16xf32>
    %34 = vector.shape_cast %33 : vector<16xf32> to vector<16x1xf32>
    %cst_14 = arith.constant 3.125000e-02 : f32
    %35 = vector.broadcast %cst_14 : f32 to vector<16x1xf32>
    %36 = arith.mulf %34, %35 : vector<16x1xf32>
    %37 = arith.mulf %32, %32 : vector<16x128xf32>
    %cst_15 = arith.constant dense<0.000000e+00> : vector<16xf32>
    %38 = vector.multi_reduction <add>, %37, %cst_15 [1] : vector<16x128xf32> to vector<16xf32>
    %39 = vector.shape_cast %38 : vector<16xf32> to vector<16x1xf32>
    %cst_16 = arith.constant 3.125000e-02 : f32
    %40 = vector.broadcast %cst_16 : f32 to vector<16x1xf32>
    %41 = arith.mulf %39, %40 : vector<16x1xf32>
    %42 = arith.mulf %36, %36 : vector<16x1xf32>
    %43 = arith.subf %41, %42 : vector<16x1xf32>
    %44 = vector.broadcast %36 : vector<16x1xf32> to vector<16x128xf32>
    %45 = arith.subf %32, %44 : vector<16x128xf32>
    %cst_17 = arith.constant 9.99999974E-6 : f32
    %46 = vector.broadcast %cst_17 : f32 to vector<16x1xf32>
    %47 = arith.addf %43, %46 : vector<16x1xf32>
    %48 = math.rsqrt %47 : vector<16x1xf32>
    %49 = vector.broadcast %48 : vector<16x1xf32> to vector<16x128xf32>
    %50 = arith.mulf %45, %49 : vector<16x128xf32>
    %c0_18 = arith.constant 0 : index
    %c0_19 = arith.constant 0 : index
    %51 = vector.load %arg4[%c0_18, %c0_19] : memref<1x128xf32, #tpu.memory_space<vmem>>, vector<1x128xf32>
    %52 = vector.broadcast %51 : vector<1x128xf32> to vector<16x128xf32>
    %53 = arith.mulf %50, %52 : vector<16x128xf32>
    %c0_20 = arith.constant 0 : index
    %c0_21 = arith.constant 0 : index
    %54 = vector.load %arg5[%c0_20, %c0_21] : memref<1x128xf32, #tpu.memory_space<vmem>>, vector<1x128xf32>
    %55 = vector.broadcast %54 : vector<1x128xf32> to vector<16x128xf32>
    %56 = arith.addf %53, %55 : vector<16x128xf32>
    %c0_22 = arith.constant 0 : index
    %c0_23 = arith.constant 0 : index
    %57 = vector.load %arg6[%c0_22, %c0_23] : memref<16x128xf32, #tpu.memory_space<vmem>>, vector<16x128xf32>
    tpu.vector_store %arg6[%c0_22, %c0_23], %56 {strides = array<i32>} : memref<16x128xf32, #tpu.memory_space<vmem>>, vector<16x128xf32>,
    return
  }
  func.func @transform_0(%arg0: i32, %arg1: memref<1xf32, #tpu.memory_space<smem>>) -> (i32, i32) {
    %c0_i32 = arith.constant 0 : i32
    %c0_i32_0 = arith.constant 0 : i32
    return %arg0, %c0_i32 : i32, i32
  }
  func.func @transform_1(%arg0: i32, %arg1: memref<1xf32, #tpu.memory_space<smem>>) -> (i32, i32) {
    %c0_i32 = arith.constant 0 : i32
    %c0_i32_0 = arith.constant 0 : i32
    %c0_i32_1 = arith.constant 0 : i32
    return %c0_i32, %c0_i32_0 : i32, i32
  }
  func.func @transform_2(%arg0: i32, %arg1: memref<1xf32, #tpu.memory_space<smem>>) -> (i32, i32) {
    %c0_i32 = arith.constant 0 : i32
    %c0_i32_0 = arith.constant 0 : i32
    %c0_i32_1 = arith.constant 0 : i32
    return %c0_i32, %c0_i32_0 : i32, i32
  }
  func.func @transform_3(%arg0: i32, %arg1: memref<1xf32, #tpu.memory_space<smem>>) -> (i32, i32) {
    %c0_i32 = arith.constant 0 : i32
    %c0_i32_0 = arith.constant 0 : i32
    %c0_i32_1 = arith.constant 0 : i32
    return %c0_i32, %c0_i32_0 : i32, i32
  }
  func.func @transform_4(%arg0: i32, %arg1: memref<1xf32, #tpu.memory_space<smem>>) -> (i32, i32) {
    %c0_i32 = arith.constant 0 : i32
    %c0_i32_0 = arith.constant 0 : i32
    return %arg0, %c0_i32 : i32, i32
  }
}

module attributes {stable_mosaic.version = 11 : i64} {
  func.func @_gottlieb_layer_kernel(%arg0: i32, %arg1: memref<1xf32, #tpu.memory_space<smem>>, %arg2: memref<16x128xf32, #tpu.memory_space<vmem>>, %arg3: memref<512x128xbf16, #tpu.memory_space<vmem>>, %arg4: memref<1x128xf32, #tpu.memory_space<vmem>>, %arg5: memref<1x128xf32, #tpu.memory_space<vmem>>, %arg6: memref<16x128xf32, #tpu.memory_space<vmem>>) attributes {dimension_semantics = [#tpu.dimension_semantics<parallel>], iteration_bounds = array<i64: 1>, scalar_prefetch = 1 : i64, scratch_operands = 0 : i64, tpu.core_type = #tpu.core_type<tc>, window_params = [{transform_indices = @transform_0, window_bounds = array<i64: 16, 128>}, {pipeline_mode = #tpu.pipeline_mode<synchronous>, transform_indices = @transform_1, window_bounds = array<i64: 512, 128>}, {pipeline_mode = #tpu.pipeline_mode<synchronous>, transform_indices = @transform_2, window_bounds = array<i64: 1, 128>}, {pipeline_mode = #tpu.pipeline_mode<synchronous>, transform_indices = @transform_3, window_bounds = array<i64: 1, 128>}, {transform_indices = @transform_4, window_bounds = array<i64: 16, 128>}]} {
    %c0 = arith.constant 0 : index
    %0 = memref.load %arg1[%c0] : memref<1xf32, #tpu.memory_space<smem>>
    %c0_0 = arith.constant 0 : index
    %c0_1 = arith.constant 0 : index
    %1 = vector.load %arg2[%c0_0, %c0_1] : memref<16x128xf32, #tpu.memory_space<vmem>>, vector<16x128xf32>
    %2 = arith.negf %1 : vector<16x128xf32>
    %3 = math.exp %2 : vector<16x128xf32>
    %cst = arith.constant 1.000000e+00 : f32
    %4 = vector.broadcast %cst : f32 to vector<16x128xf32>
    %5 = arith.addf %4, %3 : vector<16x128xf32>
    %6 = arith.divf %4, %5 : vector<16x128xf32>
    %cst_2 = arith.constant 1.000000e+00 : f32
    %7 = vector.broadcast %cst_2 : f32 to vector<16x128xf32>
    %cst_3 = arith.constant 2.000000e+00 : f32
    %8 = arith.mulf %cst_3, %0 : f32
    %9 = vector.broadcast %8 : f32 to vector<16x128xf32>
    %10 = arith.mulf %9, %6 : vector<16x128xf32>
    %cst_4 = arith.constant 1.000000e+00 : f32
    %11 = arith.addf %0, %cst_4 : f32
    %cst_5 = arith.constant 2.000000e+00 : f32
    %12 = arith.mulf %cst_5, %11 : f32
    %13 = vector.broadcast %12 : f32 to vector<16x128xf32>
    %14 = arith.mulf %13, %6 : vector<16x128xf32>
    %15 = arith.mulf %14, %10 : vector<16x128xf32>
    %cst_6 = arith.constant 2.000000e+00 : f32
    %16 = arith.addf %0, %cst_6 : f32
    %17 = vector.broadcast %16 : f32 to vector<16x128xf32>
    %18 = arith.mulf %17, %7 : vector<16x128xf32>
    %19 = arith.subf %15, %18 : vector<16x128xf32>
    %cst_7 = arith.constant 2.000000e+00 : f32
    %20 = arith.addf %0, %cst_7 : f32
    %cst_8 = arith.constant 2.000000e+00 : f32
    %21 = arith.mulf %cst_8, %20 : f32
    %22 = vector.broadcast %21 : f32 to vector<16x128xf32>
    %23 = arith.mulf %22, %6 : vector<16x128xf32>
    %24 = arith.mulf %23, %19 : vector<16x128xf32>
    %cst_9 = arith.constant 4.000000e+00 : f32
    %25 = arith.addf %0, %cst_9 : f32
    %26 = vector.broadcast %25 : f32 to vector<16x128xf32>
    %27 = arith.mulf %26, %10 : vector<16x128xf32>
    %28 = arith.subf %24, %27 : vector<16x128xf32>
    %29 = tpu.concatenate %7, %10, %19, %28 in 1 : vector<16x128xf32>, vector<16x128xf32>, vector<16x128xf32>, vector<16x128xf32> -> vector<16x512xf32>
    %30 = arith.truncf %29 : vector<16x512xf32> to vector<16x512xbf16>
    %c0_10 = arith.constant 0 : index
    %c0_11 = arith.constant 0 : index
    %31 = vector.load %arg3[%c0_10, %c0_11] : memref<512x128xbf16, #tpu.memory_space<vmem>>, vector<512x128xbf16>
    %cst_12 = arith.constant dense<0.000000e+00> : vector<16x128xf32>
    %32 = tpu.matmul %30, %31, %cst_12 {dimension_numbers = #tpu.dot_dimension_numbers<[1], [0], [0], [1], [0, 0, 1, 1], [], []>} : vector<16x512xbf16>, vector<512x128xbf16>, vector<16x128xf32> -> vector<16x128xf32>
    %c0_13 = arith.constant 0 : index
    %c0_14 = arith.constant 0 : index
    %33 = vector.load %arg6[%c0_13, %c0_14] : memref<16x128xf32, #tpu.memory_space<vmem>>, vector<16x128xf32>
    tpu.vector_store %arg6[%c0_13, %c0_14], %32 {strides = array<i32>} : memref<16x128xf32, #tpu.memory_space<vmem>>, vector<16x128xf32>,
    return
  }
  func.func @transform_0(%arg0: i32, %arg1: memref<1xf32, #tpu.memory_space<smem>>) -> (i32, i32) {
    %c0_i32 = arith.constant 0 : i32
    %c0_i32_0 = arith.constant 0 : i32
    return %arg0, %c0_i32 : i32, i32
  }
  func.func @transform_1(%arg0: i32, %arg1: memref<1xf32, #tpu.memory_space<smem>>) -> (i32, i32) {
    %c0_i32 = arith.constant 0 : i32
    %c0_i32_0 = arith.constant 0 : i32
    %c0_i32_1 = arith.constant 0 : i32
    return %c0_i32, %c0_i32_0 : i32, i32
  }
  func.func @transform_2(%arg0: i32, %arg1: memref<1xf32, #tpu.memory_space<smem>>) -> (i32, i32) {
    %c0_i32 = arith.constant 0 : i32
    %c0_i32_0 = arith.constant 0 : i32
    %c0_i32_1 = arith.constant 0 : i32
    return %c0_i32, %c0_i32_0 : i32, i32
  }
  func.func @transform_3(%arg0: i32, %arg1: memref<1xf32, #tpu.memory_space<smem>>) -> (i32, i32) {
    %c0_i32 = arith.constant 0 : i32
    %c0_i32_0 = arith.constant 0 : i32
    %c0_i32_1 = arith.constant 0 : i32
    return %c0_i32, %c0_i32_0 : i32, i32
  }
  func.func @transform_4(%arg0: i32, %arg1: memref<1xf32, #tpu.memory_space<smem>>) -> (i32, i32) {
    %c0_i32 = arith.constant 0 : i32
    %c0_i32_0 = arith.constant 0 : i32
    return %arg0, %c0_i32 : i32, i32
  }
}

</mosaic_0001>

<llo_original>
// kernel: _lambda_.3
$region0: #{_lambda_.3}
  #allocation0 [shape = 'u32[]', space=smem, size = 0x4, offset = 0x4, fixed_abs, tag = 'smem constant byte address 0x4 - core index']
  #allocation1 [shape = 'u32[144,128]{1,0:T(1,128)}', space=vmem, size = 0x12000, scoped, tag = 'internal scratch']
  #allocation2 [shape = 's32[1]{0}', space=sflag, size = 0x4, scoped, tag = 'scoped memory for _lambda_.3']
  #allocation3 [shape = 'f32[1]{0:T(128)S(6)}', space=smem, size = 0x200, scoped, tag = 'prefetched SMEM operand 0']
  %s0 = inlined_call_operand.<no memory space> [shape: f32[1], index: 0, kind: input, shape index: {}]
  %s1 = inlined_call_operand.vmem [shape: f32[16,4], index: 1, kind: input, shape index: {}]
  %s2 = inlined_call_operand.hbm [shape: bf16[16,128], index: 2, kind: input, shape index: {}]
  %s3 = inlined_call_operand.hbm [shape: f32[1,128], index: 3, kind: input, shape index: {}]
  %s4 = inlined_call_operand.vmem [shape: f32[1,128], index: 4, kind: input, shape index: {}]
  %s5 = inlined_call_operand.vmem [shape: f32[16,128], index: 5, kind: output, shape index: {}]
  %s6 = sld [smem:[#allocation0]]
  $region34: #{_lambda_.3} parent=0
    _
  %s8 = ssub.s32 1, %s6
  %s9 = scalar_select 0, %s8, %s6
  %10 = sst [smem:[#allocation3]] %s0
  $region1: #{_lambda_.3} parent=0
    #allocation4 [shape = 'u8[4096]{0}', space=vmem, size = 0x1000, scoped, tag = 'input window, operand 2, single buffered']
    #allocation5 [shape = 's32[1]{0}', space=sflag, size = 0x4, scoped, tag = 'scoped memory for _lambda_.3']
    #allocation6 [shape = 'u8[512]{0}', space=vmem, size = 0x400, scoped, tag = 'input window, operand 3, single buffered']
    #allocation7 [shape = 's32[1]{0}', space=sflag, size = 0x4, scoped, tag = 'scoped memory for _lambda_.3']
    %11 = vsyncpa [#allocation5], 0
    %12 = vsyncpa [#allocation7], 0
    // Predicated region
    $region2: #{_lambda_.3} parent=1 // pred_check
      _
    $region3: #{_lambda_.3} parent=1 // pred_check_branch
      %14 = sbr.rel (0) target = $region5
    $region4: #{_lambda_.3} parent=1 // pred_region
      _
    $region5: #{_lambda_.3} parent=1 // pred_fallthru
      _
    // Predicated region
    $region6: #{_lambda_.3} parent=1 // pred_check
      _
    $region7: #{_lambda_.3} parent=1 // pred_check_branch
      %16 = sbr.rel (0) target = $region9
    $region8: #{_lambda_.3} parent=1 // pred_region
      %s18 = ssub.s32 128, 128
      %19 = vsyncadd [#allocation5], %s18
      %s20 = sshll.u32 [#allocation4], 4
      %s21 = int_to_ptr.vmem [resolvable:$true] %s20
      %26 = dma.hbm_to_vmem [thread:$0]  %s2, 128, %s21, [#allocation5], 64, 64, 4
    $region9: #{_lambda_.3} parent=1 // pred_fallthru
      _
    // Predicated region
    $region10: #{_lambda_.3} parent=1 // pred_check
      _
    $region11: #{_lambda_.3} parent=1 // pred_check_branch
      %28 = sbr.rel (0) target = $region13
    $region12: #{_lambda_.3} parent=1 // pred_region
      %s30 = ssub.s32 16, 16
      %31 = vsyncadd [#allocation7], %s30
      %s33 = sshll.u32 [#allocation6], 4
      %s34 = int_to_ptr.vmem [resolvable:$true] %s33
      %36 = dma.hbm_to_vmem [thread:$0]  %s3, 16, %s34, [#allocation7]
    $region13: #{_lambda_.3} parent=1 // pred_fallthru
      _
    // Predicated region
    $region14: #{_lambda_.3} parent=1 // pred_check
      _
    $region15: #{_lambda_.3} parent=1 // pred_check_branch
      %38 = sbr.rel (0) target = $region17
    $region16: #{_lambda_.3} parent=1 // pred_region
      _
    $region17: #{_lambda_.3} parent=1 // pred_fallthru
      _
    // Predicated region
    $region18: #{_lambda_.3} parent=1 // pred_check
      _
    $region19: #{_lambda_.3} parent=1 // pred_check_branch
      %40 = sbr.rel (0) target = $region21
    $region20: #{_lambda_.3} parent=1 // pred_region
      %41 = dma.done [#allocation5], 128
    $region21: #{_lambda_.3} parent=1 // pred_fallthru
      _
    // Predicated region
    $region22: #{_lambda_.3} parent=1 // pred_check
      _
    $region23: #{_lambda_.3} parent=1 // pred_check_branch
      %43 = sbr.rel (0) target = $region25
    $region24: #{_lambda_.3} parent=1 // pred_region
      %44 = dma.done [#allocation7], 16
    $region25: #{_lambda_.3} parent=1 // pred_fallthru
      _
    %s46 = sld [smem:[#allocation3]]
    %v47 = vld [vmem:[%s1] sm:$0xff]
    %v48 = vld [vmem:[%s1 + $0x8] sm:$0xff]
    %v49 = vxor.u32 %v47, 2147483648
    %v50 = vxor.u32 %v48, 2147483648
    %v51 = vmul.f32 %v49, 1.442695
    %v52 = vpow.pop %v51
    %v53 = vmul.f32 %v50, 1.442695
    %v54 = vpow.pop %v53
    %v55 = vadd.f32 %v52, 1.0
    %v56 = vadd.f32 %v54, 1.0
    %v57 = vrcp.pop %v55
    %v58 = vmul.f32 1.0, %v57
    %v59 = vrcp.pop %v56
    %v60 = vmul.f32 1.0, %v59
    %s61 = smul.f32 %s46, 2.0
    %v62 = vstv %s61
    %v63 = vmul.f32 %v62, %v58
    %v64 = vmul.f32 %v62, %v60
    %s65 = sadd.f32 %s46, 1.0
    %s66 = smul.f32 %s65, 2.0
    %v67 = vstv %s66
    %v68 = vmul.f32 %v67, %v58
    %v69 = vmul.f32 %v67, %v60
    %v70 = vmul.f32 %v68, %v63
    %v71 = vmul.f32 %v69, %v64
    %s72 = sadd.f32 %s46, 2.0
    %v73 = vstv %s72
    %v74 = vsub.f32 %v70, %v73
    %v75 = vsub.f32 %v71, %v73
    %s76 = smul.f32 %s72, 2.0
    %v77 = vstv %s76
    %v78 = vmul.f32 %v77, %v58
    %v79 = vmul.f32 %v77, %v60
    %v80 = vmul.f32 %v78, %v74
    %v81 = vmul.f32 %v79, %v75
    %s82 = sadd.f32 %s46, 4.0
    %v83 = vstv %s82
    %v84 = vmul.f32 %v83, %v63
    %v85 = vmul.f32 %v83, %v64
    %v86 = vsub.f32 %v80, %v84
    %v87 = vsub.f32 %v81, %v85
    %90 = vrot.lane.b32.xlu0 %v63, 4
    %v91 = vpop.permute.xlu0 %90
    %92 = vrot.lane.b32.xlu0 %v64, 4
    %v93 = vpop.permute.xlu0 %92
    %98 = vrot.lane.b32.xlu0 %v74, 8
    %v99 = vpop.permute.xlu0 %98
    %100 = vrot.lane.b32.xlu0 %v75, 8
    %v101 = vpop.permute.xlu0 %100
    %106 = vrot.lane.b32.xlu0 %v86, 12
    %v107 = vpop.permute.xlu0 %106
    %108 = vrot.lane.b32.xlu0 %v87, 12
    %v109 = vpop.permute.xlu0 %108
    %vm112 = vcmask 31744
    %v113 = vsel %vm112, 1.0, %v91
    %v114 = vsel %vm112, 1.0, %v93
    %vm115 = vcmask 64512
    %v116 = vsel %vm115, %v113, %v99
    %v117 = vsel %vm115, %v114, %v101
    %vm118 = vcmask 97280
    %v119 = vsel %vm118, %v116, %v107
    %v120 = vsel %vm118, %v117, %v109
    %v121 = vpack.c.bf16 %v120, %v119
    %v122 = vld [vmem:[#allocation4] sm:$0xf]
    %v123 = vld [vmem:[#allocation4 + $0x4] sm:$0xf]
    %v126 = vunpack.c.l.b16 %v122
    %v127 = vunpack.c.l.b16 %v123
    %v128 = vpack.c.b16 %v127, %v126
    %vm130 = vcmask 130048
    %v132 = vsel %vm130, %v121, 0
    %134 = vmatprep.subr.bf16.mxu0 0
    %135 = vmatpush1.bf16.msra.mxu0 %v128
    %136 = vmatprep.subr.bf16.mxu0 0
    %137 = vmatpush1.bf16.msra.mxu0 0
    %138 = vmatprep.subr.bf16.mxu0 0
    %139 = vmatpush1.bf16.msra.mxu0 0
    %140 = vmatprep.subr.bf16.mxu0 0
    %141 = vmatpush1.bf16.msra.mxu0 0
    %142 = vmatprep.subr.bf16.mxu0 0
    %143 = vmatpush1.bf16.msra.mxu0 0
    %144 = vmatprep.subr.bf16.mxu0 0
    %145 = vmatpush1.bf16.msra.mxu0 0
    %146 = vmatprep.subr.bf16.mxu0 0
    %147 = vmatpush1.bf16.msra.mxu0 0
    %148 = vmatprep.subr.bf16.mxu0 0
    %149 = vmatpush1.bf16.msra.mxu0 0
    %150 = vmatprep.subr.bf16.mxu0 0
    %151 = vmatpush1.bf16.msra.mxu0 0
    %152 = vmatprep.subr.bf16.mxu0 0
    %153 = vmatpush1.bf16.msra.mxu0 0
    %154 = vmatprep.subr.bf16.mxu0 0
    %155 = vmatpush1.bf16.msra.mxu0 0
    %156 = vmatprep.subr.bf16.mxu0 0
    %157 = vmatpush1.bf16.msra.mxu0 0
    %158 = vmatprep.subr.bf16.mxu0 0
    %159 = vmatpush1.bf16.msra.mxu0 0
    %160 = vmatprep.subr.bf16.mxu0 0
    %161 = vmatpush1.bf16.msra.mxu0 0
    %162 = vmatprep.subr.bf16.mxu0 0
    %163 = vmatpush1.bf16.msra.mxu0 0
    %164 = vmatprep.subr.bf16.mxu0 0
    %165 = vmatpush1.bf16.msra.mxu0 0
    %166 = vmatprep.mubr.bf16.mxu0 0
    %167 = vmatmul.mubr.bf16.gmra.mrb[0].mxu0 %v132
    %v168 = vpop.f32.mrb[0].mxu0
    %v169 = vadd.f32 0.0, %v168
    %v170 = vpop.f32.mrb[0].mxu0
    %v171 = vpop.f32.mrb[0].mxu0
    %v172 = vadd.f32 0.0, %v171
    %v173 = vpop.f32.mrb[0].mxu0
    %174 = vdwg.mxu0
    %175 = vadd.xlane.f32.xlu0 %v169
    %v176 = vpop.xlane.xlu0 %175
    %177 = vadd.xlane.f32.xlu0 %v172
    %v178 = vpop.xlane.xlu0 %177
    %v179 = vmul.f32 %v176, 0.03125
    %v180 = vmul.f32 %v178, 0.03125
    %v181 = vmul.f32 %v169, %v169
    %v182 = vmul.f32 %v172, %v172
    %183 = vadd.xlane.f32.xlu0 %v181
    %v184 = vpop.xlane.xlu0 %183
    %185 = vadd.xlane.f32.xlu0 %v182
    %v186 = vpop.xlane.xlu0 %185
    %v187 = vmul.f32 %v184, 0.03125
    %v188 = vmul.f32 %v186, 0.03125
    %v189 = vmul.f32 %v179, %v179
    %v190 = vmul.f32 %v180, %v180
    %v191 = vsub.f32 %v187, %v189
    %v192 = vsub.f32 %v188, %v190
    %v193 = vsub.f32 %v169, %v179
    %v194 = vsub.f32 %v172, %v180
    %v195 = vadd.f32 %v191, 1e-05
    %v196 = vadd.f32 %v192, 1e-05
    %v197 = vrsqrt.pop %v195
    %v198 = vrsqrt.pop %v196
    %v199 = vmul.f32 %v193, %v197
    %v200 = vmul.f32 %v194, %v198
    %v201 = vld [vmem:[#allocation6] sm:$0x1]
    %v203 = vlaneseq
    %v204 = vshrl.u32 %v203, 7
    %v205 = vsub.s32 0, %v204
    %v206 = vrot.slane %v201, %v205
    %v208 = vmul.f32 %v199, %v206
    %v209 = vmul.f32 %v200, %v206
    %v210 = vld [vmem:[%s4] sm:$0x1]
    %v212 = vlaneseq
    %v213 = vshrl.u32 %v212, 7
    %v214 = vsub.s32 0, %v213
    %v215 = vrot.slane %v210, %v214
    %v217 = vadd.f32 %v208, %v215
    %v218 = vadd.f32 %v209, %v215
    %219 = vst [vmem:[%s5] sm:$0xff] %v217
    %220 = vst [vmem:[%s5 + $0x8] sm:$0xff] %v218
    // Predicated region
    $region26: #{_lambda_.3} parent=1 // pred_check
      _
    $region27: #{_lambda_.3} parent=1 // pred_check_branch
      %222 = sbr.rel (0) target = $region29
    $region28: #{_lambda_.3} parent=1 // pred_region
      _
    $region29: #{_lambda_.3} parent=1 // pred_fallthru
      _
    // Predicated region
    $region30: #{_lambda_.3} parent=1 // pred_check
      _
    $region31: #{_lambda_.3} parent=1 // pred_check_branch
      %224 = sbr.rel (0) target = $region33
    $region32: #{_lambda_.3} parent=1 // pred_region
      _
    $region33: #{_lambda_.3} parent=1 // pred_fallthru
      _
    %225 = vsyncpa [#allocation5], 1
    %226 = vsyncpa [#allocation7], 1

// kernel: _lambda_.4
$region0: #{_lambda_.4}
  #allocation0 [shape = 'u32[]', space=smem, size = 0x4, offset = 0x4, fixed_abs, tag = 'smem constant byte address 0x4 - core index']
  #allocation1 [shape = 'u32[144,128]{1,0:T(1,128)}', space=vmem, size = 0x12000, scoped, tag = 'internal scratch']
  #allocation2 [shape = 's32[1]{0}', space=sflag, size = 0x4, scoped, tag = 'scoped memory for _lambda_.4']
  #allocation3 [shape = 'f32[1]{0:T(128)S(6)}', space=smem, size = 0x200, scoped, tag = 'prefetched SMEM operand 0']
  %s0 = inlined_call_operand.<no memory space> [shape: f32[1], index: 0, kind: input, shape index: {}]
  %s1 = inlined_call_operand.vmem [shape: f32[16,128], index: 1, kind: input, shape index: {}]
  %s2 = inlined_call_operand.hbm [shape: bf16[512,128], index: 2, kind: input, shape index: {}]
  %s3 = inlined_call_operand.hbm [shape: f32[1,128], index: 3, kind: input, shape index: {}]
  %s4 = inlined_call_operand.vmem [shape: f32[1,128], index: 4, kind: input, shape index: {}]
  %s5 = inlined_call_operand.vmem [shape: f32[16,128], index: 5, kind: output, shape index: {}]
  %s6 = sld [smem:[#allocation0]]
  $region34: #{_lambda_.4} parent=0
    _
  %s8 = ssub.s32 1, %s6
  %s9 = scalar_select 0, %s8, %s6
  %10 = sst [smem:[#allocation3]] %s0
  $region1: #{_lambda_.4} parent=0
    #allocation4 [shape = 'u8[131072]{0}', space=vmem, size = 0x20000, scoped, tag = 'input window, operand 2, single buffered']
    #allocation5 [shape = 's32[1]{0}', space=sflag, size = 0x4, scoped, tag = 'scoped memory for _lambda_.4']
    #allocation6 [shape = 'u8[512]{0}', space=vmem, size = 0x400, scoped, tag = 'input window, operand 3, single buffered']
    #allocation7 [shape = 's32[1]{0}', space=sflag, size = 0x4, scoped, tag = 'scoped memory for _lambda_.4']
    %11 = vsyncpa [#allocation5], 0
    %12 = vsyncpa [#allocation7], 0
    // Predicated region
    $region2: #{_lambda_.4} parent=1 // pred_check
      _
    $region3: #{_lambda_.4} parent=1 // pred_check_branch
      %14 = sbr.rel (0) target = $region5
    $region4: #{_lambda_.4} parent=1 // pred_region
      _
    $region5: #{_lambda_.4} parent=1 // pred_fallthru
      _
    // Predicated region
    $region6: #{_lambda_.4} parent=1 // pred_check
      _
    $region7: #{_lambda_.4} parent=1 // pred_check_branch
      %16 = sbr.rel (0) target = $region9
    $region8: #{_lambda_.4} parent=1 // pred_region
      %s18 = ssub.s32 4096, 4096
      %19 = vsyncadd [#allocation5], %s18
      %s20 = sshll.u32 [#allocation4], 4
      %s21 = int_to_ptr.vmem [resolvable:$true] %s20
      %26 = dma.hbm_to_vmem [thread:$0]  %s2, 4096, %s21, [#allocation5], 64, 64, 4
    $region9: #{_lambda_.4} parent=1 // pred_fallthru
      _
    // Predicated region
    $region10: #{_lambda_.4} parent=1 // pred_check
      _
    $region11: #{_lambda_.4} parent=1 // pred_check_branch
      %28 = sbr.rel (0) target = $region13
    $region12: #{_lambda_.4} parent=1 // pred_region
      %s30 = ssub.s32 16, 16
      %31 = vsyncadd [#allocation7], %s30
      %s33 = sshll.u32 [#allocation6], 4
      %s34 = int_to_ptr.vmem [resolvable:$true] %s33
      %36 = dma.hbm_to_vmem [thread:$0]  %s3, 16, %s34, [#allocation7]
    $region13: #{_lambda_.4} parent=1 // pred_fallthru
      _
    // Predicated region
    $region14: #{_lambda_.4} parent=1 // pred_check
      _
    $region15: #{_lambda_.4} parent=1 // pred_check_branch
      %38 = sbr.rel (0) target = $region17
    $region16: #{_lambda_.4} parent=1 // pred_region
      _
    $region17: #{_lambda_.4} parent=1 // pred_fallthru
      _
    // Predicated region
    $region18: #{_lambda_.4} parent=1 // pred_check
      _
    $region19: #{_lambda_.4} parent=1 // pred_check_branch
      %40 = sbr.rel (0) target = $region21
    $region20: #{_lambda_.4} parent=1 // pred_region
      %41 = dma.done [#allocation5], 4096
    $region21: #{_lambda_.4} parent=1 // pred_fallthru
      _
    // Predicated region
    $region22: #{_lambda_.4} parent=1 // pred_check
      _
    $region23: #{_lambda_.4} parent=1 // pred_check_branch
      %43 = sbr.rel (0) target = $region25
    $region24: #{_lambda_.4} parent=1 // pred_region
      %44 = dma.done [#allocation7], 16
    $region25: #{_lambda_.4} parent=1 // pred_fallthru
      _
    %s46 = sld [smem:[#allocation3]]
    %v47 = vld [vmem:[%s1] sm:$0xff]
    %v48 = vld [vmem:[%s1 + $0x8] sm:$0xff]
    %v49 = vxor.u32 %v47, 2147483648
    %v50 = vxor.u32 %v48, 2147483648
    %v51 = vmul.f32 %v49, 1.442695
    %v52 = vpow.pop %v51
    %v53 = vmul.f32 %v50, 1.442695
    %v54 = vpow.pop %v53
    %v55 = vadd.f32 %v52, 1.0
    %v56 = vadd.f32 %v54, 1.0
    %v57 = vrcp.pop %v55
    %v58 = vmul.f32 1.0, %v57
    %v59 = vrcp.pop %v56
    %v60 = vmul.f32 1.0, %v59
    %s61 = smul.f32 %s46, 2.0
    %v62 = vstv %s61
    %v63 = vmul.f32 %v62, %v58
    %v64 = vmul.f32 %v62, %v60
    %s65 = sadd.f32 %s46, 1.0
    %s66 = smul.f32 %s65, 2.0
    %v67 = vstv %s66
    %v68 = vmul.f32 %v67, %v58
    %v69 = vmul.f32 %v67, %v60
    %v70 = vmul.f32 %v68, %v63
    %v71 = vmul.f32 %v69, %v64
    %s72 = sadd.f32 %s46, 2.0
    %v73 = vstv %s72
    %v74 = vsub.f32 %v70, %v73
    %v75 = vsub.f32 %v71, %v73
    %s76 = smul.f32 %s72, 2.0
    %v77 = vstv %s76
    %v78 = vmul.f32 %v77, %v58
    %v79 = vmul.f32 %v77, %v60
    %v80 = vmul.f32 %v78, %v74
    %v81 = vmul.f32 %v79, %v75
    %s82 = sadd.f32 %s46, 4.0
    %v83 = vstv %s82
    %v84 = vmul.f32 %v83, %v63
    %v85 = vmul.f32 %v83, %v64
    %v86 = vsub.f32 %v80, %v84
    %v87 = vsub.f32 %v81, %v85
    %v88 = vpack.c.bf16 1.0, 1.0
    %v89 = vpack.c.bf16 %v64, %v63
    %v90 = vpack.c.bf16 %v75, %v74
    %v91 = vpack.c.bf16 %v87, %v86
    %v92 = vld [vmem:[#allocation4] sm:$0xf]
    %v93 = vld [vmem:[#allocation4 + $0x4] sm:$0xf]
    %v94 = vld [vmem:[#allocation4 + $0x8] sm:$0xf]
    %v95 = vld [vmem:[#allocation4 + $0xc] sm:$0xf]
    %v96 = vld [vmem:[#allocation4 + $0x10] sm:$0xf]
    %v97 = vld [vmem:[#allocation4 + $0x14] sm:$0xf]
    %v98 = vld [vmem:[#allocation4 + $0x18] sm:$0xf]
    %v99 = vld [vmem:[#allocation4 + $0x1c] sm:$0xf]
    %v100 = vld [vmem:[#allocation4 + $0x20] sm:$0xf]
    %v101 = vld [vmem:[#allocation4 + $0x24] sm:$0xf]
    %v102 = vld [vmem:[#allocation4 + $0x28] sm:$0xf]
    %v103 = vld [vmem:[#allocation4 + $0x2c] sm:$0xf]
    %v104 = vld [vmem:[#allocation4 + $0x30] sm:$0xf]
    %v105 = vld [vmem:[#allocation4 + $0x34] sm:$0xf]
    %v106 = vld [vmem:[#allocation4 + $0x38] sm:$0xf]
    %v107 = vld [vmem:[#allocation4 + $0x3c] sm:$0xf]
    %v108 = vld [vmem:[#allocation4 + $0x40] sm:$0xf]
    %v109 = vld [vmem:[#allocation4 + $0x44] sm:$0xf]
    %v110 = vld [vmem:[#allocation4 + $0x48] sm:$0xf]
    %v111 = vld [vmem:[#allocation4 + $0x4c] sm:$0xf]
    %v112 = vld [vmem:[#allocation4 + $0x50] sm:$0xf]
    %v113 = vld [vmem:[#allocation4 + $0x54] sm:$0xf]
    %v114 = vld [vmem:[#allocation4 + $0x58] sm:$0xf]
    %v115 = vld [vmem:[#allocation4 + $0x5c] sm:$0xf]
    %v116 = vld [vmem:[#allocation4 + $0x60] sm:$0xf]
    %v117 = vld [vmem:[#allocation4 + $0x64] sm:$0xf]
    %v118 = vld [vmem:[#allocation4 + $0x68] sm:$0xf]
    %v119 = vld [vmem:[#allocation4 + $0x6c] sm:$0xf]
    %v120 = vld [vmem:[#allocation4 + $0x70] sm:$0xf]
    %v121 = vld [vmem:[#allocation4 + $0x74] sm:$0xf]
    %v122 = vld [vmem:[#allocation4 + $0x78] sm:$0xf]
    %v123 = vld [vmem:[#allocation4 + $0x7c] sm:$0xf]
    %v124 = vld [vmem:[#allocation4 + $0x80] sm:$0xf]
    %v125 = vld [vmem:[#allocation4 + $0x84] sm:$0xf]
    %v126 = vld [vmem:[#allocation4 + $0x88] sm:$0xf]
    %v127 = vld [vmem:[#allocation4 + $0x8c] sm:$0xf]
    %v128 = vld [vmem:[#allocation4 + $0x90] sm:$0xf]
    %v129 = vld [vmem:[#allocation4 + $0x94] sm:$0xf]
    %v130 = vld [vmem:[#allocation4 + $0x98] sm:$0xf]
    %v131 = vld [vmem:[#allocation4 + $0x9c] sm:$0xf]
    %v132 = vld [vmem:[#allocation4 + $0xa0] sm:$0xf]
    %v133 = vld [vmem:[#allocation4 + $0xa4] sm:$0xf]
    %v134 = vld [vmem:[#allocation4 + $0xa8] sm:$0xf]
    %v135 = vld [vmem:[#allocation4 + $0xac] sm:$0xf]
    %v136 = vld [vmem:[#allocation4 + $0xb0] sm:$0xf]
    %v137 = vld [vmem:[#allocation4 + $0xb4] sm:$0xf]
    %v138 = vld [vmem:[#allocation4 + $0xb8] sm:$0xf]
    %v139 = vld [vmem:[#allocation4 + $0xbc] sm:$0xf]
    %v140 = vld [vmem:[#allocation4 + $0xc0] sm:$0xf]
    %v141 = vld [vmem:[#allocation4 + $0xc4] sm:$0xf]
    %v142 = vld [vmem:[#allocation4 + $0xc8] sm:$0xf]
    %v143 = vld [vmem:[#allocation4 + $0xcc] sm:$0xf]
    %v144 = vld [vmem:[#allocation4 + $0xd0] sm:$0xf]
    %v145 = vld [vmem:[#allocation4 + $0xd4] sm:$0xf]
    %v146 = vld [vmem:[#allocation4 + $0xd8] sm:$0xf]
    %v147 = vld [vmem:[#allocation4 + $0xdc] sm:$0xf]
    %v148 = vld [vmem:[#allocation4 + $0xe0] sm:$0xf]
    %v149 = vld [vmem:[#allocation4 + $0xe4] sm:$0xf]
    %v150 = vld [vmem:[#allocation4 + $0xe8] sm:$0xf]
    %v151 = vld [vmem:[#allocation4 + $0xec] sm:$0xf]
    %v152 = vld [vmem:[#allocation4 + $0xf0] sm:$0xf]
    %v153 = vld [vmem:[#allocation4 + $0xf4] sm:$0xf]
    %v154 = vld [vmem:[#allocation4 + $0xf8] sm:$0xf]
    %v155 = vld [vmem:[#allocation4 + $0xfc] sm:$0xf]
    %v220 = vunpack.c.l.b16 %v92
    %v221 = vunpack.c.l.b16 %v93
    %v222 = vunpack.c.l.b16 %v94
    %v223 = vunpack.c.l.b16 %v95
    %v224 = vunpack.c.l.b16 %v96
    %v225 = vunpack.c.l.b16 %v97
    %v226 = vunpack.c.l.b16 %v98
    %v227 = vunpack.c.l.b16 %v99
    %v228 = vunpack.c.l.b16 %v100
    %v229 = vunpack.c.l.b16 %v101
    %v230 = vunpack.c.l.b16 %v102
    %v231 = vunpack.c.l.b16 %v103
    %v232 = vunpack.c.l.b16 %v104
    %v233 = vunpack.c.l.b16 %v105
    %v234 = vunpack.c.l.b16 %v106
    %v235 = vunpack.c.l.b16 %v107
    %v236 = vunpack.c.l.b16 %v108
    %v237 = vunpack.c.l.b16 %v109
    %v238 = vunpack.c.l.b16 %v110
    %v239 = vunpack.c.l.b16 %v111
    %v240 = vunpack.c.l.b16 %v112
    %v241 = vunpack.c.l.b16 %v113
    %v242 = vunpack.c.l.b16 %v114
    %v243 = vunpack.c.l.b16 %v115
    %v244 = vunpack.c.l.b16 %v116
    %v245 = vunpack.c.l.b16 %v117
    %v246 = vunpack.c.l.b16 %v118
    %v247 = vunpack.c.l.b16 %v119
    %v248 = vunpack.c.l.b16 %v120
    %v249 = vunpack.c.l.b16 %v121
    %v250 = vunpack.c.l.b16 %v122
    %v251 = vunpack.c.l.b16 %v123
    %v252 = vunpack.c.l.b16 %v124
    %v253 = vunpack.c.l.b16 %v125
    %v254 = vunpack.c.l.b16 %v126
    %v255 = vunpack.c.l.b16 %v127
    %v256 = vunpack.c.l.b16 %v128
    %v257 = vunpack.c.l.b16 %v129
    %v258 = vunpack.c.l.b16 %v130
    %v259 = vunpack.c.l.b16 %v131
    %v260 = vunpack.c.l.b16 %v132
    %v261 = vunpack.c.l.b16 %v133
    %v262 = vunpack.c.l.b16 %v134
    %v263 = vunpack.c.l.b16 %v135
    %v264 = vunpack.c.l.b16 %v136
    %v265 = vunpack.c.l.b16 %v137
    %v266 = vunpack.c.l.b16 %v138
    %v267 = vunpack.c.l.b16 %v139
    %v268 = vunpack.c.l.b16 %v140
    %v269 = vunpack.c.l.b16 %v141
    %v270 = vunpack.c.l.b16 %v142
    %v271 = vunpack.c.l.b16 %v143
    %v272 = vunpack.c.l.b16 %v144
    %v273 = vunpack.c.l.b16 %v145
    %v274 = vunpack.c.l.b16 %v146
    %v275 = vunpack.c.l.b16 %v147
    %v276 = vunpack.c.l.b16 %v148
    %v277 = vunpack.c.l.b16 %v149
    %v278 = vunpack.c.l.b16 %v150
    %v279 = vunpack.c.l.b16 %v151
    %v280 = vunpack.c.l.b16 %v152
    %v281 = vunpack.c.l.b16 %v153
    %v282 = vunpack.c.l.b16 %v154
    %v283 = vunpack.c.l.b16 %v155
    %v284 = vpack.c.b16 %v221, %v220
    %v285 = vpack.c.b16 %v223, %v222
    %v286 = vpack.c.b16 %v225, %v224
    %v287 = vpack.c.b16 %v227, %v226
    %v288 = vpack.c.b16 %v229, %v228
    %v289 = vpack.c.b16 %v231, %v230
    %v290 = vpack.c.b16 %v233, %v232
    %v291 = vpack.c.b16 %v235, %v234
    %v292 = vpack.c.b16 %v237, %v236
    %v293 = vpack.c.b16 %v239, %v238
    %v294 = vpack.c.b16 %v241, %v240
    %v295 = vpack.c.b16 %v243, %v242
    %v296 = vpack.c.b16 %v245, %v244
    %v297 = vpack.c.b16 %v247, %v246
    %v298 = vpack.c.b16 %v249, %v248
    %v299 = vpack.c.b16 %v251, %v250
    %v300 = vpack.c.b16 %v253, %v252
    %v301 = vpack.c.b16 %v255, %v254
    %v302 = vpack.c.b16 %v257, %v256
    %v303 = vpack.c.b16 %v259, %v258
    %v304 = vpack.c.b16 %v261, %v260
    %v305 = vpack.c.b16 %v263, %v262
    %v306 = vpack.c.b16 %v265, %v264
    %v307 = vpack.c.b16 %v267, %v266
    %v308 = vpack.c.b16 %v269, %v268
    %v309 = vpack.c.b16 %v271, %v270
    %v310 = vpack.c.b16 %v273, %v272
    %v311 = vpack.c.b16 %v275, %v274
    %v312 = vpack.c.b16 %v277, %v276
    %v313 = vpack.c.b16 %v279, %v278
    %v314 = vpack.c.b16 %v281, %v280
    %v315 = vpack.c.b16 %v283, %v282
    %348 = vmatprep.subr.bf16.mxu0 0
    %349 = vmatpush1.bf16.msra.mxu0 %v284
    %350 = vmatprep.subr.bf16.mxu0 0
    %351 = vmatpush1.bf16.msra.mxu0 %v285
    %352 = vmatprep.subr.bf16.mxu0 0
    %353 = vmatpush1.bf16.msra.mxu0 %v286
    %354 = vmatprep.subr.bf16.mxu0 0
    %355 = vmatpush1.bf16.msra.mxu0 %v287
    %356 = vmatprep.subr.bf16.mxu0 0
    %357 = vmatpush1.bf16.msra.mxu0 %v288
    %358 = vmatprep.subr.bf16.mxu0 0
    %359 = vmatpush1.bf16.msra.mxu0 %v289
    %360 = vmatprep.subr.bf16.mxu0 0
    %361 = vmatpush1.bf16.msra.mxu0 %v290
    %362 = vmatprep.subr.bf16.mxu0 0
    %363 = vmatpush1.bf16.msra.mxu0 %v291
    %364 = vmatprep.subr.bf16.mxu0 0
    %365 = vmatpush1.bf16.msra.mxu0 %v292
    %366 = vmatprep.subr.bf16.mxu0 0
    %367 = vmatpush1.bf16.msra.mxu0 %v293
    %368 = vmatprep.subr.bf16.mxu0 0
    %369 = vmatpush1.bf16.msra.mxu0 %v294
    %370 = vmatprep.subr.bf16.mxu0 0
    %371 = vmatpush1.bf16.msra.mxu0 %v295
    %372 = vmatprep.subr.bf16.mxu0 0
    %373 = vmatpush1.bf16.msra.mxu0 %v296
    %374 = vmatprep.subr.bf16.mxu0 0
    %375 = vmatpush1.bf16.msra.mxu0 %v297
    %376 = vmatprep.subr.bf16.mxu0 0
    %377 = vmatpush1.bf16.msra.mxu0 %v298
    %378 = vmatprep.subr.bf16.mxu0 0
    %379 = vmatpush1.bf16.msra.mxu0 %v299
    %380 = vmatprep.mubr.bf16.mxu0 %v89
    %381 = vmatmul.mubr.bf16.gmra.mrb[0].mxu0 %v88
    %v382 = vpop.f32.mrb[0].mxu0
    %v383 = vadd.f32 0.0, %v382
    %v384 = vpop.f32.mrb[0].mxu0
    %v385 = vpop.f32.mrb[0].mxu0
    %v386 = vadd.f32 0.0, %v385
    %v387 = vpop.f32.mrb[0].mxu0
    %388 = vdwg.mxu0
    %389 = vmatprep.subr.bf16.mxu0 0
    %390 = vmatpush1.bf16.msra.mxu0 %v300
    %391 = vmatprep.subr.bf16.mxu0 0
    %392 = vmatpush1.bf16.msra.mxu0 %v301
    %393 = vmatprep.subr.bf16.mxu0 0
    %394 = vmatpush1.bf16.msra.mxu0 %v302
    %395 = vmatprep.subr.bf16.mxu0 0
    %396 = vmatpush1.bf16.msra.mxu0 %v303
    %397 = vmatprep.subr.bf16.mxu0 0
    %398 = vmatpush1.bf16.msra.mxu0 %v304
    %399 = vmatprep.subr.bf16.mxu0 0
    %400 = vmatpush1.bf16.msra.mxu0 %v305
    %401 = vmatprep.subr.bf16.mxu0 0
    %402 = vmatpush1.bf16.msra.mxu0 %v306
    %403 = vmatprep.subr.bf16.mxu0 0
    %404 = vmatpush1.bf16.msra.mxu0 %v307
    %405 = vmatprep.subr.bf16.mxu0 0
    %406 = vmatpush1.bf16.msra.mxu0 %v308
    %407 = vmatprep.subr.bf16.mxu0 0
    %408 = vmatpush1.bf16.msra.mxu0 %v309
    %409 = vmatprep.subr.bf16.mxu0 0
    %410 = vmatpush1.bf16.msra.mxu0 %v310
    %411 = vmatprep.subr.bf16.mxu0 0
    %412 = vmatpush1.bf16.msra.mxu0 %v311
    %413 = vmatprep.subr.bf16.mxu0 0
    %414 = vmatpush1.bf16.msra.mxu0 %v312
    %415 = vmatprep.subr.bf16.mxu0 0
    %416 = vmatpush1.bf16.msra.mxu0 %v313
    %417 = vmatprep.subr.bf16.mxu0 0
    %418 = vmatpush1.bf16.msra.mxu0 %v314
    %419 = vmatprep.subr.bf16.mxu0 0
    %420 = vmatpush1.bf16.msra.mxu0 %v315
    %421 = vmatprep.mubr.bf16.mxu0 %v91
    %422 = vmatmul.mubr.bf16.gmra.mrb[0].mxu0 %v90
    %v423 = vpop.f32.mrb[0].mxu0
    %v424 = vadd.f32 %v383, %v423
    %v425 = vpop.f32.mrb[0].mxu0
    %v426 = vpop.f32.mrb[0].mxu0
    %v427 = vadd.f32 %v386, %v426
    %v428 = vpop.f32.mrb[0].mxu0
    %429 = vdwg.mxu0
    %430 = vadd.xlane.f32.xlu0 %v424
    %v431 = vpop.xlane.xlu0 %430
    %432 = vadd.xlane.f32.xlu0 %v427
    %v433 = vpop.xlane.xlu0 %432
    %v434 = vmul.f32 %v431, 0.03125
    %v435 = vmul.f32 %v433, 0.03125
    %v436 = vmul.f32 %v424, %v424
    %v437 = vmul.f32 %v427, %v427
    %438 = vadd.xlane.f32.xlu0 %v436
    %v439 = vpop.xlane.xlu0 %438
    %440 = vadd.xlane.f32.xlu0 %v437
    %v441 = vpop.xlane.xlu0 %440
    %v442 = vmul.f32 %v439, 0.03125
    %v443 = vmul.f32 %v441, 0.03125
    %v444 = vmul.f32 %v434, %v434
    %v445 = vmul.f32 %v435, %v435
    %v446 = vsub.f32 %v442, %v444
    %v447 = vsub.f32 %v443, %v445
    %v448 = vsub.f32 %v424, %v434
    %v449 = vsub.f32 %v427, %v435
    %v450 = vadd.f32 %v446, 1e-05
    %v451 = vadd.f32 %v447, 1e-05
    %v452 = vrsqrt.pop %v450
    %v453 = vrsqrt.pop %v451
    %v454 = vmul.f32 %v448, %v452
    %v455 = vmul.f32 %v449, %v453
    %v456 = vld [vmem:[#allocation6] sm:$0x1]
    %v458 = vlaneseq
    %v459 = vshrl.u32 %v458, 7
    %v460 = vsub.s32 0, %v459
    %v461 = vrot.slane %v456, %v460
    %v463 = vmul.f32 %v454, %v461
    %v464 = vmul.f32 %v455, %v461
    %v465 = vld [vmem:[%s4] sm:$0x1]
    %v467 = vlaneseq
    %v468 = vshrl.u32 %v467, 7
    %v469 = vsub.s32 0, %v468
    %v470 = vrot.slane %v465, %v469
    %v472 = vadd.f32 %v463, %v470
    %v473 = vadd.f32 %v464, %v470
    %474 = vst [vmem:[%s5] sm:$0xff] %v472
    %475 = vst [vmem:[%s5 + $0x8] sm:$0xff] %v473
    // Predicated region
    $region26: #{_lambda_.4} parent=1 // pred_check
      _
    $region27: #{_lambda_.4} parent=1 // pred_check_branch
      %477 = sbr.rel (0) target = $region29
    $region28: #{_lambda_.4} parent=1 // pred_region
      _
    $region29: #{_lambda_.4} parent=1 // pred_fallthru
      _
    // Predicated region
    $region30: #{_lambda_.4} parent=1 // pred_check
      _
    $region31: #{_lambda_.4} parent=1 // pred_check_branch
      %479 = sbr.rel (0) target = $region33
    $region32: #{_lambda_.4} parent=1 // pred_region
      _
    $region33: #{_lambda_.4} parent=1 // pred_fallthru
      _
    %480 = vsyncpa [#allocation5], 1
    %481 = vsyncpa [#allocation7], 1

// kernel: _lambda_.5
$region0: #{_lambda_.5}
  #allocation0 [shape = 'u32[]', space=smem, size = 0x4, offset = 0x4, fixed_abs, tag = 'smem constant byte address 0x4 - core index']
  #allocation1 [shape = 'u32[144,128]{1,0:T(1,128)}', space=vmem, size = 0x12000, scoped, tag = 'internal scratch']
  #allocation2 [shape = 's32[1]{0}', space=sflag, size = 0x4, scoped, tag = 'scoped memory for _lambda_.5']
  #allocation3 [shape = 'f32[1]{0:T(128)S(6)}', space=smem, size = 0x200, scoped, tag = 'prefetched SMEM operand 0']
  %s0 = inlined_call_operand.<no memory space> [shape: f32[1], index: 0, kind: input, shape index: {}]
  %s1 = inlined_call_operand.vmem [shape: f32[16,128], index: 1, kind: input, shape index: {}]
  %s2 = inlined_call_operand.vmem [shape: bf16[512,128], index: 2, kind: input, shape index: {}]
  %s3 = inlined_call_operand.vmem [shape: f32[1,128], index: 3, kind: input, shape index: {}]
  %s4 = inlined_call_operand.vmem [shape: f32[1,128], index: 4, kind: input, shape index: {}]
  %s5 = inlined_call_operand.vmem [shape: f32[16,128], index: 5, kind: output, shape index: {}]
  %s6 = sld [smem:[#allocation0]]
  $region26: #{_lambda_.5} parent=0
    _
  %s8 = ssub.s32 1, %s6
  %s9 = scalar_select 0, %s8, %s6
  %10 = sst [smem:[#allocation3]] %s0
  // Predicated region
  $region2: #{_lambda_.5} parent=0 // pred_check
    _
  $region3: #{_lambda_.5} parent=0 // pred_check_branch
    %12 = sbr.rel (0) target = $region5
  $region4: #{_lambda_.5} parent=0 // pred_region
    _
  $region5: #{_lambda_.5} parent=0 // pred_fallthru
    _
  // Predicated region
  $region6: #{_lambda_.5} parent=0 // pred_check
    _
  $region7: #{_lambda_.5} parent=0 // pred_check_branch
    %14 = sbr.rel (0) target = $region9
  $region8: #{_lambda_.5} parent=0 // pred_region
    _
  $region9: #{_lambda_.5} parent=0 // pred_fallthru
    _
  // Predicated region
  $region10: #{_lambda_.5} parent=0 // pred_check
    _
  $region11: #{_lambda_.5} parent=0 // pred_check_branch
    %16 = sbr.rel (0) target = $region13
  $region12: #{_lambda_.5} parent=0 // pred_region
    _
  $region13: #{_lambda_.5} parent=0 // pred_fallthru
    _
  // Predicated region
  $region14: #{_lambda_.5} parent=0 // pred_check
    _
  $region15: #{_lambda_.5} parent=0 // pred_check_branch
    %18 = sbr.rel (0) target = $region17
  $region16: #{_lambda_.5} parent=0 // pred_region
    _
  $region17: #{_lambda_.5} parent=0 // pred_fallthru
    _
  %s20 = sld [smem:[#allocation3]]
  %v21 = vld [vmem:[%s1] sm:$0xff]
  %v22 = vld [vmem:[%s1 + $0x8] sm:$0xff]
  %v23 = vxor.u32 %v21, 2147483648
  %v24 = vxor.u32 %v22, 2147483648
  %v25 = vmul.f32 %v23, 1.442695
  %v26 = vpow.pop %v25
  %v27 = vmul.f32 %v24, 1.442695
  %v28 = vpow.pop %v27
  %v29 = vadd.f32 %v26, 1.0
  %v30 = vadd.f32 %v28, 1.0
  %v31 = vrcp.pop %v29
  %v32 = vmul.f32 1.0, %v31
  %v33 = vrcp.pop %v30
  %v34 = vmul.f32 1.0, %v33
  %s35 = smul.f32 %s20, 2.0
  %v36 = vstv %s35
  %v37 = vmul.f32 %v36, %v32
  %v38 = vmul.f32 %v36, %v34
  %s39 = sadd.f32 %s20, 1.0
  %s40 = smul.f32 %s39, 2.0
  %v41 = vstv %s40
  %v42 = vmul.f32 %v41, %v32
  %v43 = vmul.f32 %v41, %v34
  %v44 = vmul.f32 %v42, %v37
  %v45 = vmul.f32 %v43, %v38
  %s46 = sadd.f32 %s20, 2.0
  %v47 = vstv %s46
  %v48 = vsub.f32 %v44, %v47
  %v49 = vsub.f32 %v45, %v47
  %s50 = smul.f32 %s46, 2.0
  %v51 = vstv %s50
  %v52 = vmul.f32 %v51, %v32
  %v53 = vmul.f32 %v51, %v34
  %v54 = vmul.f32 %v52, %v48
  %v55 = vmul.f32 %v53, %v49
  %s56 = sadd.f32 %s20, 4.0
  %v57 = vstv %s56
  %v58 = vmul.f32 %v57, %v37
  %v59 = vmul.f32 %v57, %v38
  %v60 = vsub.f32 %v54, %v58
  %v61 = vsub.f32 %v55, %v59
  %v62 = vpack.c.bf16 1.0, 1.0
  %v63 = vpack.c.bf16 %v38, %v37
  %v64 = vpack.c.bf16 %v49, %v48
  %v65 = vpack.c.bf16 %v61, %v60
  %v66 = vld [vmem:[%s2] sm:$0xf]
  %v67 = vld [vmem:[%s2 + $0x4] sm:$0xf]
  %v68 = vld [vmem:[%s2 + $0x8] sm:$0xf]
  %v69 = vld [vmem:[%s2 + $0xc] sm:$0xf]
  %v70 = vld [vmem:[%s2 + $0x10] sm:$0xf]
  %v71 = vld [vmem:[%s2 + $0x14] sm:$0xf]
  %v72 = vld [vmem:[%s2 + $0x18] sm:$0xf]
  %v73 = vld [vmem:[%s2 + $0x1c] sm:$0xf]
  %v74 = vld [vmem:[%s2 + $0x20] sm:$0xf]
  %v75 = vld [vmem:[%s2 + $0x24] sm:$0xf]
  %v76 = vld [vmem:[%s2 + $0x28] sm:$0xf]
  %v77 = vld [vmem:[%s2 + $0x2c] sm:$0xf]
  %v78 = vld [vmem:[%s2 + $0x30] sm:$0xf]
  %v79 = vld [vmem:[%s2 + $0x34] sm:$0xf]
  %v80 = vld [vmem:[%s2 + $0x38] sm:$0xf]
  %v81 = vld [vmem:[%s2 + $0x3c] sm:$0xf]
  %v82 = vld [vmem:[%s2 + $0x40] sm:$0xf]
  %v83 = vld [vmem:[%s2 + $0x44] sm:$0xf]
  %v84 = vld [vmem:[%s2 + $0x48] sm:$0xf]
  %v85 = vld [vmem:[%s2 + $0x4c] sm:$0xf]
  %v86 = vld [vmem:[%s2 + $0x50] sm:$0xf]
  %v87 = vld [vmem:[%s2 + $0x54] sm:$0xf]
  %v88 = vld [vmem:[%s2 + $0x58] sm:$0xf]
  %v89 = vld [vmem:[%s2 + $0x5c] sm:$0xf]
  %v90 = vld [vmem:[%s2 + $0x60] sm:$0xf]
  %v91 = vld [vmem:[%s2 + $0x64] sm:$0xf]
  %v92 = vld [vmem:[%s2 + $0x68] sm:$0xf]
  %v93 = vld [vmem:[%s2 + $0x6c] sm:$0xf]
  %v94 = vld [vmem:[%s2 + $0x70] sm:$0xf]
  %v95 = vld [vmem:[%s2 + $0x74] sm:$0xf]
  %v96 = vld [vmem:[%s2 + $0x78] sm:$0xf]
  %v97 = vld [vmem:[%s2 + $0x7c] sm:$0xf]
  %v98 = vld [vmem:[%s2 + $0x80] sm:$0xf]
  %v99 = vld [vmem:[%s2 + $0x84] sm:$0xf]
  %v100 = vld [vmem:[%s2 + $0x88] sm:$0xf]
  %v101 = vld [vmem:[%s2 + $0x8c] sm:$0xf]
  %v102 = vld [vmem:[%s2 + $0x90] sm:$0xf]
  %v103 = vld [vmem:[%s2 + $0x94] sm:$0xf]
  %v104 = vld [vmem:[%s2 + $0x98] sm:$0xf]
  %v105 = vld [vmem:[%s2 + $0x9c] sm:$0xf]
  %v106 = vld [vmem:[%s2 + $0xa0] sm:$0xf]
  %v107 = vld [vmem:[%s2 + $0xa4] sm:$0xf]
  %v108 = vld [vmem:[%s2 + $0xa8] sm:$0xf]
  %v109 = vld [vmem:[%s2 + $0xac] sm:$0xf]
  %v110 = vld [vmem:[%s2 + $0xb0] sm:$0xf]
  %v111 = vld [vmem:[%s2 + $0xb4] sm:$0xf]
  %v112 = vld [vmem:[%s2 + $0xb8] sm:$0xf]
  %v113 = vld [vmem:[%s2 + $0xbc] sm:$0xf]
  %v114 = vld [vmem:[%s2 + $0xc0] sm:$0xf]
  %v115 = vld [vmem:[%s2 + $0xc4] sm:$0xf]
  %v116 = vld [vmem:[%s2 + $0xc8] sm:$0xf]
  %v117 = vld [vmem:[%s2 + $0xcc] sm:$0xf]
  %v118 = vld [vmem:[%s2 + $0xd0] sm:$0xf]
  %v119 = vld [vmem:[%s2 + $0xd4] sm:$0xf]
  %v120 = vld [vmem:[%s2 + $0xd8] sm:$0xf]
  %v121 = vld [vmem:[%s2 + $0xdc] sm:$0xf]
  %v122 = vld [vmem:[%s2 + $0xe0] sm:$0xf]
  %v123 = vld [vmem:[%s2 + $0xe4] sm:$0xf]
  %v124 = vld [vmem:[%s2 + $0xe8] sm:$0xf]
  %v125 = vld [vmem:[%s2 + $0xec] sm:$0xf]
  %v126 = vld [vmem:[%s2 + $0xf0] sm:$0xf]
  %v127 = vld [vmem:[%s2 + $0xf4] sm:$0xf]
  %v128 = vld [vmem:[%s2 + $0xf8] sm:$0xf]
  %v129 = vld [vmem:[%s2 + $0xfc] sm:$0xf]
  %v194 = vunpack.c.l.b16 %v66
  %v195 = vunpack.c.l.b16 %v67
  %v196 = vunpack.c.l.b16 %v68
  %v197 = vunpack.c.l.b16 %v69
  %v198 = vunpack.c.l.b16 %v70
  %v199 = vunpack.c.l.b16 %v71
  %v200 = vunpack.c.l.b16 %v72
  %v201 = vunpack.c.l.b16 %v73
  %v202 = vunpack.c.l.b16 %v74
  %v203 = vunpack.c.l.b16 %v75
  %v204 = vunpack.c.l.b16 %v76
  %v205 = vunpack.c.l.b16 %v77
  %v206 = vunpack.c.l.b16 %v78
  %v207 = vunpack.c.l.b16 %v79
  %v208 = vunpack.c.l.b16 %v80
  %v209 = vunpack.c.l.b16 %v81
  %v210 = vunpack.c.l.b16 %v82
  %v211 = vunpack.c.l.b16 %v83
  %v212 = vunpack.c.l.b16 %v84
  %v213 = vunpack.c.l.b16 %v85
  %v214 = vunpack.c.l.b16 %v86
  %v215 = vunpack.c.l.b16 %v87
  %v216 = vunpack.c.l.b16 %v88
  %v217 = vunpack.c.l.b16 %v89
  %v218 = vunpack.c.l.b16 %v90
  %v219 = vunpack.c.l.b16 %v91
  %v220 = vunpack.c.l.b16 %v92
  %v221 = vunpack.c.l.b16 %v93
  %v222 = vunpack.c.l.b16 %v94
  %v223 = vunpack.c.l.b16 %v95
  %v224 = vunpack.c.l.b16 %v96
  %v225 = vunpack.c.l.b16 %v97
  %v226 = vunpack.c.l.b16 %v98
  %v227 = vunpack.c.l.b16 %v99
  %v228 = vunpack.c.l.b16 %v100
  %v229 = vunpack.c.l.b16 %v101
  %v230 = vunpack.c.l.b16 %v102
  %v231 = vunpack.c.l.b16 %v103
  %v232 = vunpack.c.l.b16 %v104
  %v233 = vunpack.c.l.b16 %v105
  %v234 = vunpack.c.l.b16 %v106
  %v235 = vunpack.c.l.b16 %v107
  %v236 = vunpack.c.l.b16 %v108
  %v237 = vunpack.c.l.b16 %v109
  %v238 = vunpack.c.l.b16 %v110
  %v239 = vunpack.c.l.b16 %v111
  %v240 = vunpack.c.l.b16 %v112
  %v241 = vunpack.c.l.b16 %v113
  %v242 = vunpack.c.l.b16 %v114
  %v243 = vunpack.c.l.b16 %v115
  %v244 = vunpack.c.l.b16 %v116
  %v245 = vunpack.c.l.b16 %v117
  %v246 = vunpack.c.l.b16 %v118
  %v247 = vunpack.c.l.b16 %v119
  %v248 = vunpack.c.l.b16 %v120
  %v249 = vunpack.c.l.b16 %v121
  %v250 = vunpack.c.l.b16 %v122
  %v251 = vunpack.c.l.b16 %v123
  %v252 = vunpack.c.l.b16 %v124
  %v253 = vunpack.c.l.b16 %v125
  %v254 = vunpack.c.l.b16 %v126
  %v255 = vunpack.c.l.b16 %v127
  %v256 = vunpack.c.l.b16 %v128
  %v257 = vunpack.c.l.b16 %v129
  %v258 = vpack.c.b16 %v195, %v194
  %v259 = vpack.c.b16 %v197, %v196
  %v260 = vpack.c.b16 %v199, %v198
  %v261 = vpack.c.b16 %v201, %v200
  %v262 = vpack.c.b16 %v203, %v202
  %v263 = vpack.c.b16 %v205, %v204
  %v264 = vpack.c.b16 %v207, %v206
  %v265 = vpack.c.b16 %v209, %v208
  %v266 = vpack.c.b16 %v211, %v210
  %v267 = vpack.c.b16 %v213, %v212
  %v268 = vpack.c.b16 %v215, %v214
  %v269 = vpack.c.b16 %v217, %v216
  %v270 = vpack.c.b16 %v219, %v218
  %v271 = vpack.c.b16 %v221, %v220
  %v272 = vpack.c.b16 %v223, %v222
  %v273 = vpack.c.b16 %v225, %v224
  %v274 = vpack.c.b16 %v227, %v226
  %v275 = vpack.c.b16 %v229, %v228
  %v276 = vpack.c.b16 %v231, %v230
  %v277 = vpack.c.b16 %v233, %v232
  %v278 = vpack.c.b16 %v235, %v234
  %v279 = vpack.c.b16 %v237, %v236
  %v280 = vpack.c.b16 %v239, %v238
  %v281 = vpack.c.b16 %v241, %v240
  %v282 = vpack.c.b16 %v243, %v242
  %v283 = vpack.c.b16 %v245, %v244
  %v284 = vpack.c.b16 %v247, %v246
  %v285 = vpack.c.b16 %v249, %v248
  %v286 = vpack.c.b16 %v251, %v250
  %v287 = vpack.c.b16 %v253, %v252
  %v288 = vpack.c.b16 %v255, %v254
  %v289 = vpack.c.b16 %v257, %v256
  %322 = vmatprep.subr.bf16.mxu0 0
  %323 = vmatpush1.bf16.msra.mxu0 %v258
  %324 = vmatprep.subr.bf16.mxu0 0
  %325 = vmatpush1.bf16.msra.mxu0 %v259
  %326 = vmatprep.subr.bf16.mxu0 0
  %327 = vmatpush1.bf16.msra.mxu0 %v260
  %328 = vmatprep.subr.bf16.mxu0 0
  %329 = vmatpush1.bf16.msra.mxu0 %v261
  %330 = vmatprep.subr.bf16.mxu0 0
  %331 = vmatpush1.bf16.msra.mxu0 %v262
  %332 = vmatprep.subr.bf16.mxu0 0
  %333 = vmatpush1.bf16.msra.mxu0 %v263
  %334 = vmatprep.subr.bf16.mxu0 0
  %335 = vmatpush1.bf16.msra.mxu0 %v264
  %336 = vmatprep.subr.bf16.mxu0 0
  %337 = vmatpush1.bf16.msra.mxu0 %v265
  %338 = vmatprep.subr.bf16.mxu0 0
  %339 = vmatpush1.bf16.msra.mxu0 %v266
  %340 = vmatprep.subr.bf16.mxu0 0
  %341 = vmatpush1.bf16.msra.mxu0 %v267
  %342 = vmatprep.subr.bf16.mxu0 0
  %343 = vmatpush1.bf16.msra.mxu0 %v268
  %344 = vmatprep.subr.bf16.mxu0 0
  %345 = vmatpush1.bf16.msra.mxu0 %v269
  %346 = vmatprep.subr.bf16.mxu0 0
  %347 = vmatpush1.bf16.msra.mxu0 %v270
  %348 = vmatprep.subr.bf16.mxu0 0
  %349 = vmatpush1.bf16.msra.mxu0 %v271
  %350 = vmatprep.subr.bf16.mxu0 0
  %351 = vmatpush1.bf16.msra.mxu0 %v272
  %352 = vmatprep.subr.bf16.mxu0 0
  %353 = vmatpush1.bf16.msra.mxu0 %v273
  %354 = vmatprep.mubr.bf16.mxu0 %v63
  %355 = vmatmul.mubr.bf16.gmra.mrb[0].mxu0 %v62
  %v356 = vpop.f32.mrb[0].mxu0
  %v357 = vadd.f32 0.0, %v356
  %v358 = vpop.f32.mrb[0].mxu0
  %v359 = vpop.f32.mrb[0].mxu0
  %v360 = vadd.f32 0.0, %v359
  %v361 = vpop.f32.mrb[0].mxu0
  %362 = vdwg.mxu0
  %363 = vmatprep.subr.bf16.mxu0 0
  %364 = vmatpush1.bf16.msra.mxu0 %v274
  %365 = vmatprep.subr.bf16.mxu0 0
  %366 = vmatpush1.bf16.msra.mxu0 %v275
  %367 = vmatprep.subr.bf16.mxu0 0
  %368 = vmatpush1.bf16.msra.mxu0 %v276
  %369 = vmatprep.subr.bf16.mxu0 0
  %370 = vmatpush1.bf16.msra.mxu0 %v277
  %371 = vmatprep.subr.bf16.mxu0 0
  %372 = vmatpush1.bf16.msra.mxu0 %v278
  %373 = vmatprep.subr.bf16.mxu0 0
  %374 = vmatpush1.bf16.msra.mxu0 %v279
  %375 = vmatprep.subr.bf16.mxu0 0
  %376 = vmatpush1.bf16.msra.mxu0 %v280
  %377 = vmatprep.subr.bf16.mxu0 0
  %378 = vmatpush1.bf16.msra.mxu0 %v281
  %379 = vmatprep.subr.bf16.mxu0 0
  %380 = vmatpush1.bf16.msra.mxu0 %v282
  %381 = vmatprep.subr.bf16.mxu0 0
  %382 = vmatpush1.bf16.msra.mxu0 %v283
  %383 = vmatprep.subr.bf16.mxu0 0
  %384 = vmatpush1.bf16.msra.mxu0 %v284
  %385 = vmatprep.subr.bf16.mxu0 0
  %386 = vmatpush1.bf16.msra.mxu0 %v285
  %387 = vmatprep.subr.bf16.mxu0 0
  %388 = vmatpush1.bf16.msra.mxu0 %v286
  %389 = vmatprep.subr.bf16.mxu0 0
  %390 = vmatpush1.bf16.msra.mxu0 %v287
  %391 = vmatprep.subr.bf16.mxu0 0
  %392 = vmatpush1.bf16.msra.mxu0 %v288
  %393 = vmatprep.subr.bf16.mxu0 0
  %394 = vmatpush1.bf16.msra.mxu0 %v289
  %395 = vmatprep.mubr.bf16.mxu0 %v65
  %396 = vmatmul.mubr.bf16.gmra.mrb[0].mxu0 %v64
  %v397 = vpop.f32.mrb[0].mxu0
  %v398 = vadd.f32 %v357, %v397
  %v399 = vpop.f32.mrb[0].mxu0
  %v400 = vpop.f32.mrb[0].mxu0
  %v401 = vadd.f32 %v360, %v400
  %v402 = vpop.f32.mrb[0].mxu0
  %403 = vdwg.mxu0
  %404 = vst [vmem:[%s5] sm:$0xff] %v398
  %405 = vst [vmem:[%s5 + $0x8] sm:$0xff] %v401
  // Predicated region
  $region18: #{_lambda_.5} parent=0 // pred_check
    _
  $region19: #{_lambda_.5} parent=0 // pred_check_branch
    %407 = sbr.rel (0) target = $region21
  $region20: #{_lambda_.5} parent=0 // pred_region
    _
  $region21: #{_lambda_.5} parent=0 // pred_fallthru
    _
  // Predicated region
  $region22: #{_lambda_.5} parent=0 // pred_check
    _
  $region23: #{_lambda_.5} parent=0 // pred_check_branch
    %409 = sbr.rel (0) target = $region25
  $region24: #{_lambda_.5} parent=0 // pred_region
    _
  $region25: #{_lambda_.5} parent=0 // pred_fallthru
    _

</llo_original>
